<compile_context>
chip_gen: v5e
topology: v5e:2x2
jax: 0.10.0
libtpu: 0.0.40
codegen_flags: <defaults>
</compile_context>

<pallas_src>
import functools

import jax
import jax.numpy as jnp
import numpy as np
from jax import lax
from jax.experimental import pallas as pl
from jax.experimental.pallas import tpu as pltpu


def _round_up(x, m):
    return ((x + m - 1) // m) * m


# ----------------------------------------------------------------------------
# Haar butterfly (always computed in f32; exact for the +-0.5 taps):
#   p00 = 0.5 * ( hh + hl + lh + ll)   -> out(2i+0, 2j+0)
#   p01 = 0.5 * (-hh + hl - lh + ll)   -> out(2i+0, 2j+1)
#   p10 = 0.5 * (-hh - hl + lh + ll)   -> out(2i+1, 2j+0)
#   p11 = 0.5 * ( hh - hl - lh + ll)   -> out(2i+1, 2j+1)
# ----------------------------------------------------------------------------
def _haar_butterfly(hh_ref, hl_ref, lh_ref, ll_ref):
    f32 = jnp.float32
    hh = hh_ref[...].astype(f32)
    hl = hl_ref[...].astype(f32)
    lh = lh_ref[...].astype(f32)
    ll = ll_ref[...].astype(f32)
    a = ll + hh
    b = ll - hh
    c = hl + lh
    d = hl - lh
    return 0.5 * (a + c), 0.5 * (b + d), 0.5 * (b - d), 0.5 * (a - c)


def _idwt_fused_kernel(hh_ref, hl_ref, lh_ref, ll_ref, out_ref):
    """Butterfly + full sub-pixel interleave.  Output row layout (4W lanes):
       [ 2W: ky=0 row with kx interleaved | 2W: ky=1 row with kx interleaved ]."""
    p00, p01, p10, p11 = _haar_butterfly(hh_ref, hl_ref, lh_ref, ll_ref)
    tm, w = p00.shape
    odt = out_ref.dtype
    row0 = jnp.stack([p00, p01], axis=-1).reshape(tm, 2 * w)   # lane interleave
    row1 = jnp.stack([p10, p11], axis=-1).reshape(tm, 2 * w)
    out_ref[:, : 2 * w] = row0.astype(odt)
    out_ref[:, 2 * w :] = row1.astype(odt)


def _idwt_phases_kernel(hh_ref, hl_ref, lh_ref, ll_ref, out_ref):
    """Fallback: butterfly only; phases stored as four contiguous lane blocks
       [p00 | p01 | p10 | p11]; the kx interleave is one XLA transpose."""
    p00, p01, p10, p11 = _haar_butterfly(hh_ref, hl_ref, lh_ref, ll_ref)
    tm, w = p00.shape
    odt = out_ref.dtype
    out_ref[:, 0 * w : 1 * w] = p00.astype(odt)
    out_ref[:, 1 * w : 2 * w] = p01.astype(odt)
    out_ref[:, 2 * w : 3 * w] = p10.astype(odt)
    out_ref[:, 3 * w : 4 * w] = p11.astype(odt)


def _pick_block_rows(rows, w, itemsize, block_rows):
    """Row tile: multiple of 8, ~20 MiB of double-buffered VMEM, >=2 grid steps."""
    if block_rows is None:
        # 2 pipeline buffers * (4 input blocks tm*W + 1 output block tm*4W)
        #   = 16 * tm * W elements of double-buffered VMEM.
        budget_elems = (20 * 1024 * 1024) // itemsize
        block_rows = max(8, min(1024, budget_elems // (16 * w)))
    block_rows = max(8, _round_up(block_rows, 8))
    if rows <= 8:
        return rows                       # single tiny block (full extent)
    # Cap at ~rows/2 so the grid has >=2 steps and both v7x TensorCores run
    # (no effect on v5e/v6e which have a single TensorCore).
    return min(block_rows, max(8, _round_up(pl.cdiv(rows, 2), 8)))


def _build_idwt_call(rows, w, tm, dtype, fused):
    kernel = _idwt_fused_kernel if fused else _idwt_phases_kernel
    in_spec = pl.BlockSpec((tm, w), lambda i: (i, 0))
    return pl.pallas_call(
        kernel,
        out_shape=jax.ShapeDtypeStruct((rows, 4 * w), dtype),
        grid=(pl.cdiv(rows, tm),),
        in_specs=[in_spec] * 4,
        out_specs=pl.BlockSpec((tm, 4 * w), lambda i: (i, 0)),
        compiler_params=pltpu.CompilerParams(
            dimension_semantics=("parallel",),        # megacore split on v7x
            vmem_limit_bytes=32 * 1024 * 1024),       # v5e default is only 16 MiB
    )


@functools.lru_cache(maxsize=None)
def _fused_interleave_compiles(rows, w, tm, dtype):
    """Probe-compile the fused kernel for this shape.  Mosaic support for the
    in-register lane interleave (stack+reshape) can vary, so fall back cleanly
    to the phase-blocked kernel + XLA transpose if it is rejected."""
    call = _build_idwt_call(rows, w, tm, dtype, fused=True)
    args = [jax.ShapeDtypeStruct((rows, w), dtype)] * 4
    try:
        jax.jit(call).lower(*args).compile()
        return True
    except Exception:
        return False


# ----------------------------------------------------------------------------
# Public wrapper: NCHW in, NCHW out (matches the PyTorch module forward).
# ----------------------------------------------------------------------------
def idwt_conv(hh, hl, lh, ll, *, block_rows=None, interleave_in_kernel=None):
    n, c, h, w = hh.shape
    rows = n * c * h
    dtype = np.dtype(hh.dtype)
    tm = _pick_block_rows(rows, w, dtype.itemsize, block_rows)

    if interleave_in_kernel is None:
        interleave_in_kernel = _fused_interleave_compiles(rows, w, tm, dtype)

    call = _build_idwt_call(rows, w, tm, dtype, fused=interleave_in_kernel)
    bands = [x.reshape(rows, w) for x in (hh, hl, lh, ll)]   # free reshapes
    out2d = call(*bands)                                     # (rows, 4W)

    if interleave_in_kernel:
        # Rows already hold [ky=0 (kx interleaved) | ky=1 (kx interleaved)],
        # exactly NCHW memory order of (N, C, 2H, 2W): free reshape, no copy.
        return out2d.reshape(n, c, 2 * h, 2 * w)

    # Fallback: rows hold [p00 | p01 | p10 | p11]; one fused XLA transpose
    # interleaves kx (still in the original dtype, so half the bytes of the
    # old forced-f32 path when the inputs are bf16).
    ph = out2d.reshape(n, c, h, 2, 2, w)                     # (n,c,i,ky,kx,j)
    return jnp.transpose(ph, (0, 1, 2, 3, 5, 4)).reshape(n, c, 2 * h, 2 * w)


# ----------------------------------------------------------------------------
# Pure-JAX reference with PyTorch semantics (real transposed convolutions via
# lax.conv_general_dilated), used as an independent correctness check.
# ----------------------------------------------------------------------------
def _ref_forward(hh, hl, lh, ll):
    c = hh.shape[1]
    dn = ("NCHW", "OIHW", "NCHW")

    def upconv(x, w2):
        # depthwise conv_transpose2d(stride=2, k=2, pad=0, groups=C)
        w = jnp.broadcast_to(jnp.flip(w2, (0, 1))[None, None], (c, 1, 2, 2))
        return lax.conv_general_dilated(
            x, w, window_strides=(1, 1), padding=[(1, 1), (1, 1)],
            lhs_dilation=(2, 2), dimension_numbers=dn, feature_group_count=c)

    w_hh = jnp.array([[0.5, -0.5], [-0.5, 0.5]], jnp.float32)
    w_hl = jnp.array([[0.5, 0.5], [-0.5, -0.5]], jnp.float32)
    w_lh = jnp.array([[0.5, -0.5], [0.5, -0.5]], jnp.float32)
    w_ll = jnp.array([[0.5, 0.5], [0.5, 0.5]], jnp.float32)
    return (upconv(hh, w_hh) + upconv(hl, w_hl)
            + upconv(lh, w_lh) + upconv(ll, w_ll))


if __name__ == "__main__":
    key = jax.random.PRNGKey(0)
    k_hh, k_hl, k_lh, k_ll = jax.random.split(key, 4)

    batch, ch, hw = 2, 4, 16               # output will be (2, 4, 32, 32)
    shape = (batch, ch, hw, hw)
    hh = jax.random.normal(k_hh, shape, jnp.float32)
    hl = jax.random.normal(k_hl, shape, jnp.float32)
    lh = jax.random.normal(k_lh, shape, jnp.float32)
    ll = jax.random.normal(k_ll, shape, jnp.float32)

    ref = _ref_forward(hh, hl, lh, ll)

    # Main path (auto: fused interleave if Mosaic accepts it, else fallback).
    # block_rows=32 -> rows = 2*4*16 = 128 -> grid = (4,) so the demo
    # exercises a genuinely multi-step, pipelined grid.
    fwd = jax.jit(functools.partial(idwt_conv, block_rows=32))
    out = fwd(hh, hl, lh, ll)
    jax.block_until_ready(out)
    np.testing.assert_allclose(np.asarray(out), np.asarray(ref),
                               rtol=1e-5, atol=1e-5)
    assert out.shape == (batch, ch, 2 * hw, 2 * hw)

    # Also exercise the always-available fallback path explicitly.
    fwd_fb = jax.jit(functools.partial(idwt_conv, block_rows=32,
                                       interleave_in_kernel=False))
    out_fb = fwd_fb(hh, hl, lh, ll)
    jax.block_until_ready(out_fb)
    np.testing.assert_allclose(np.asarray(out_fb), np.asarray(ref),
                               rtol=1e-5, atol=1e-5)

    print("KERNEL_OK")
</pallas_src>

<mosaic_0001>
module attributes {stable_mosaic.version = 11 : i64} {
  func.func @_idwt_phases_kernel(%arg0: i32, %arg1: memref<32x16xf32, #tpu.memory_space<vmem>>, %arg2: memref<32x16xf32, #tpu.memory_space<vmem>>, %arg3: memref<32x16xf32, #tpu.memory_space<vmem>>, %arg4: memref<32x16xf32, #tpu.memory_space<vmem>>, %arg5: memref<32x64xf32, #tpu.memory_space<vmem>>) attributes {dimension_semantics = [#tpu.dimension_semantics<parallel>], iteration_bounds = array<i64: 4>, scalar_prefetch = 0 : i64, scratch_operands = 0 : i64, tpu.core_type = #tpu.core_type<tc>, window_params = [{transform_indices = @transform_0, window_bounds = array<i64: 32, 16>}, {transform_indices = @transform_1, window_bounds = array<i64: 32, 16>}, {transform_indices = @transform_2, window_bounds = array<i64: 32, 16>}, {transform_indices = @transform_3, window_bounds = array<i64: 32, 16>}, {transform_indices = @transform_4, window_bounds = array<i64: 32, 64>}]} {
    %c0 = arith.constant 0 : index
    %c0_0 = arith.constant 0 : index
    %0 = vector.load %arg1[%c0, %c0_0] : memref<32x16xf32, #tpu.memory_space<vmem>>, vector<32x16xf32>
    %c0_1 = arith.constant 0 : index
    %c0_2 = arith.constant 0 : index
    %1 = vector.load %arg2[%c0_1, %c0_2] : memref<32x16xf32, #tpu.memory_space<vmem>>, vector<32x16xf32>
    %c0_3 = arith.constant 0 : index
    %c0_4 = arith.constant 0 : index
    %2 = vector.load %arg3[%c0_3, %c0_4] : memref<32x16xf32, #tpu.memory_space<vmem>>, vector<32x16xf32>
    %c0_5 = arith.constant 0 : index
    %c0_6 = arith.constant 0 : index
    %3 = vector.load %arg4[%c0_5, %c0_6] : memref<32x16xf32, #tpu.memory_space<vmem>>, vector<32x16xf32>
    %4 = arith.addf %3, %0 : vector<32x16xf32>
    %5 = arith.subf %3, %0 : vector<32x16xf32>
    %6 = arith.addf %1, %2 : vector<32x16xf32>
    %7 = arith.subf %1, %2 : vector<32x16xf32>
    %8 = arith.addf %4, %6 : vector<32x16xf32>
    %cst = arith.constant 5.000000e-01 : f32
    %9 = vector.broadcast %cst : f32 to vector<32x16xf32>
    %10 = arith.mulf %9, %8 : vector<32x16xf32>
    %11 = arith.addf %5, %7 : vector<32x16xf32>
    %cst_7 = arith.constant 5.000000e-01 : f32
    %12 = vector.broadcast %cst_7 : f32 to vector<32x16xf32>
    %13 = arith.mulf %12, %11 : vector<32x16xf32>
    %14 = arith.subf %5, %7 : vector<32x16xf32>
    %cst_8 = arith.constant 5.000000e-01 : f32
    %15 = vector.broadcast %cst_8 : f32 to vector<32x16xf32>
    %16 = arith.mulf %15, %14 : vector<32x16xf32>
    %17 = arith.subf %4, %6 : vector<32x16xf32>
    %cst_9 = arith.constant 5.000000e-01 : f32
    %18 = vector.broadcast %cst_9 : f32 to vector<32x16xf32>
    %19 = arith.mulf %18, %17 : vector<32x16xf32>
    %c0_10 = arith.constant 0 : index
    %c0_11 = arith.constant 0 : index
    %20 = vector.load %arg5[%c0_10, %c0_11] : memref<32x64xf32, #tpu.memory_space<vmem>>, vector<32x16xf32>
    tpu.vector_store %arg5[%c0_10, %c0_11], %10 {strides = array<i32>} : memref<32x64xf32, #tpu.memory_space<vmem>>, vector<32x16xf32>,
    %c0_12 = arith.constant 0 : index
    %c16 = arith.constant 16 : index
    %21 = vector.load %arg5[%c0_12, %c16] : memref<32x64xf32, #tpu.memory_space<vmem>>, vector<32x16xf32>
    tpu.vector_store %arg5[%c0_12, %c16], %13 {strides = array<i32>} : memref<32x64xf32, #tpu.memory_space<vmem>>, vector<32x16xf32>,
    %c0_13 = arith.constant 0 : index
    %c32 = arith.constant 32 : index
    %22 = vector.load %arg5[%c0_13, %c32] : memref<32x64xf32, #tpu.memory_space<vmem>>, vector<32x16xf32>
    tpu.vector_store %arg5[%c0_13, %c32], %16 {strides = array<i32>} : memref<32x64xf32, #tpu.memory_space<vmem>>, vector<32x16xf32>,
    %c0_14 = arith.constant 0 : index
    %c48 = arith.constant 48 : index
    %23 = vector.load %arg5[%c0_14, %c48] : memref<32x64xf32, #tpu.memory_space<vmem>>, vector<32x16xf32>
    tpu.vector_store %arg5[%c0_14, %c48], %19 {strides = array<i32>} : memref<32x64xf32, #tpu.memory_space<vmem>>, vector<32x16xf32>,
    return
  }
  func.func @transform_0(%arg0: i32) -> (i32, i32) {
    %c0_i32 = arith.constant 0 : i32
    %c0_i32_0 = arith.constant 0 : i32
    return %arg0, %c0_i32 : i32, i32
  }
  func.func @transform_1(%arg0: i32) -> (i32, i32) {
    %c0_i32 = arith.constant 0 : i32
    %c0_i32_0 = arith.constant 0 : i32
    return %arg0, %c0_i32 : i32, i32
  }
  func.func @transform_2(%arg0: i32) -> (i32, i32) {
    %c0_i32 = arith.constant 0 : i32
    %c0_i32_0 = arith.constant 0 : i32
    return %arg0, %c0_i32 : i32, i32
  }
  func.func @transform_3(%arg0: i32) -> (i32, i32) {
    %c0_i32 = arith.constant 0 : i32
    %c0_i32_0 = arith.constant 0 : i32
    return %arg0, %c0_i32 : i32, i32
  }
  func.func @transform_4(%arg0: i32) -> (i32, i32) {
    %c0_i32 = arith.constant 0 : i32
    %c0_i32_0 = arith.constant 0 : i32
    return %arg0, %c0_i32 : i32, i32
  }
}

</mosaic_0001>

<llo_original>
// kernel: idwt_conv.1
$region0: #{idwt_conv.1}
  #allocation0 [shape = 'u32[]', space=smem, size = 0x4, offset = 0x4, fixed_abs, tag = 'smem constant byte address 0x4 - core index']
  #allocation1 [shape = 'u32[72,128]{1,0:T(1,128)}', space=vmem, size = 0x9000, scoped, tag = 'internal scratch']
  %s0 = inlined_call_operand.hbm [shape: f32[128,16], index: 0, kind: input, shape index: {}]
  %s1 = inlined_call_operand.hbm [shape: f32[128,16], index: 1, kind: input, shape index: {}]
  %s2 = inlined_call_operand.hbm [shape: f32[128,16], index: 2, kind: input, shape index: {}]
  %s3 = inlined_call_operand.hbm [shape: f32[128,16], index: 3, kind: input, shape index: {}]
  %s4 = inlined_call_operand.vmem [shape: f32[128,64], index: 4, kind: output, shape index: {}]
  %s5 = sld [smem:[#allocation0]]
  $region65: #{idwt_conv.1} parent=0
    _
  %s7 = ssub.s32 1, %s5
  %s8 = scalar_select 0, %s7, %s5
  $region1: #{idwt_conv.1} parent=0
    #allocation2 [shape = 'u8[32768]{0}', space=vmem, size = 0x8000, scoped, tag = 'input window, operand 0']
    #allocation3 [shape = 's32[2]{0}', space=sflag, size = 0x8, scoped, tag = 'scoped memory for idwt_conv.1']
    #allocation4 [shape = 'u8[32768]{0}', space=vmem, size = 0x8000, scoped, tag = 'input window, operand 1']
    #allocation5 [shape = 's32[2]{0}', space=sflag, size = 0x8, scoped, tag = 'scoped memory for idwt_conv.1']
    #allocation6 [shape = 'u8[32768]{0}', space=vmem, size = 0x8000, scoped, tag = 'input window, operand 2']
    #allocation7 [shape = 'u8[32768]{0}', space=vmem, size = 0x8000, scoped, tag = 'input window, operand 3']
    #allocation8 [shape = 's32[2]{0}', space=sflag, size = 0x8, scoped, tag = 'scoped memory for idwt_conv.1']
    %9 = vsyncpa [#allocation3], 0
    %s10 = scalar_lea.sflag [#allocation3], 1
    %11 = vsyncpa %s10, 0
    %12 = vsyncpa [#allocation5], 0
    %s13 = scalar_lea.sflag [#allocation5], 1
    %14 = vsyncpa %s13, 0
    %15 = vsyncpa [#allocation8], 0
    %s16 = scalar_lea.sflag [#allocation8], 1
    %17 = vsyncpa %s16, 0
    loop: start=0, step=1, limit=6
    $region2: #{idwt_conv.1} parent=1 // loop_pre_header
      _
    $region3: #{idwt_conv.1} parent=1 // loop_header
      %s19 = sphi 0, %s23
      %p20 = scmp.ge.s32.totalorder %s19, 6
      %s29 = sphi 0, %s31
      %s32 = sphi 0, %s29
      %s33 = sphi 0, %s32
      %s49 = sphi 0, %s33
      %s55 = sphi 0, %s57
      %s58 = sphi 0, %s55
      %s59 = sphi 0, %s58
      %s75 = sphi 0, %s59
      %s81 = sphi 0, %s83
      %s84 = sphi 0, %s81
      %s85 = sphi 0, %s84
      %s101 = sphi 0, %s85
      %s107 = sphi 0, %s109
      %s110 = sphi 0, %s107
      %s111 = sphi 0, %s110
      %s127 = sphi 0, %s111
      %s133 = sphi 0, %s135
      %s136 = sphi 0, %s133
      %s137 = sphi 0, %s136
      %s153 = sphi 0, %s137
    $region4: #{idwt_conv.1} parent=1 // loop_header_branch
      %22 = sbr.rel (%p20) target = $region8
    $region5: #{idwt_conv.1} parent=1 // loop_body
      %s24 = ssub.s32 %s19, 1
      %s25 = ssub.s32 %s19, 2
      %s26 = sadd.s32 %s19, 1
      %s27 = ssub.s32 %s19, %s26
      %p28 = scmp.eq.s32.totalorder %s27, 0
      %s30 = sadd.s32 %s29, 1
      %s31 = scalar_select %p28, %s29, %s30
      %p34 = pneg %p28
      %p35 = scmp.eq.s32.totalorder %s19, 3
      %p36 = por %p34, %p35
      %p37 = scmp.ne.s32.totalorder %s29, %s32
      %p38 = scmp.eq.s32.totalorder %s19, 0
      %p39 = por %p37, %p38
      %p40 = scmp.ne.s32.totalorder %s29, %s32
      %p41 = scmp.eq.s32.totalorder %s24, 3
      %p42 = por %p40, %p41
      %p43 = scmp.ne.s32.totalorder %s32, %s33
      %p44 = scmp.eq.s32.totalorder %s24, 0
      %p45 = por %p43, %p44
      %p46 = scmp.ne.s32.totalorder %s32, %s33
      %p47 = scmp.eq.s32.totalorder %s25, 3
      %p48 = por %p46, %p47
      %p50 = scmp.ne.s32.totalorder %s33, %s49
      %p51 = scmp.eq.s32.totalorder %s25, 0
      %p52 = por %p50, %p51
      %s53 = ssub.s32 %s19, %s26
      %p54 = scmp.eq.s32.totalorder %s53, 0
      %s56 = sadd.s32 %s55, 1
      %s57 = scalar_select %p54, %s55, %s56
      %p60 = pneg %p54
      %p61 = scmp.eq.s32.totalorder %s19, 3
      %p62 = por %p60, %p61
      %p63 = scmp.ne.s32.totalorder %s55, %s58
      %p64 = scmp.eq.s32.totalorder %s19, 0
      %p65 = por %p63, %p64
      %p66 = scmp.ne.s32.totalorder %s55, %s58
      %p67 = scmp.eq.s32.totalorder %s24, 3
      %p68 = por %p66, %p67
      %p69 = scmp.ne.s32.totalorder %s58, %s59
      %p70 = scmp.eq.s32.totalorder %s24, 0
      %p71 = por %p69, %p70
      %p72 = scmp.ne.s32.totalorder %s58, %s59
      %p73 = scmp.eq.s32.totalorder %s25, 3
      %p74 = por %p72, %p73
      %p76 = scmp.ne.s32.totalorder %s59, %s75
      %p77 = scmp.eq.s32.totalorder %s25, 0
      %p78 = por %p76, %p77
      %s79 = ssub.s32 %s19, %s26
      %p80 = scmp.eq.s32.totalorder %s79, 0
      %s82 = sadd.s32 %s81, 1
      %s83 = scalar_select %p80, %s81, %s82
      %p86 = pneg %p80
      %p87 = scmp.eq.s32.totalorder %s19, 3
      %p88 = por %p86, %p87
      %p89 = scmp.ne.s32.totalorder %s81, %s84
      %p90 = scmp.eq.s32.totalorder %s19, 0
      %p91 = por %p89, %p90
      %p92 = scmp.ne.s32.totalorder %s81, %s84
      %p93 = scmp.eq.s32.totalorder %s24, 3
      %p94 = por %p92, %p93
      %p95 = scmp.ne.s32.totalorder %s84, %s85
      %p96 = scmp.eq.s32.totalorder %s24, 0
      %p97 = por %p95, %p96
      %p98 = scmp.ne.s32.totalorder %s84, %s85
      %p99 = scmp.eq.s32.totalorder %s25, 3
      %p100 = por %p98, %p99
      %p102 = scmp.ne.s32.totalorder %s85, %s101
      %p103 = scmp.eq.s32.totalorder %s25, 0
      %p104 = por %p102, %p103
      %s105 = ssub.s32 %s19, %s26
      %p106 = scmp.eq.s32.totalorder %s105, 0
      %s108 = sadd.s32 %s107, 1
      %s109 = scalar_select %p106, %s107, %s108
      %p112 = pneg %p106
      %p113 = scmp.eq.s32.totalorder %s19, 3
      %p114 = por %p112, %p113
      %p115 = scmp.ne.s32.totalorder %s107, %s110
      %p116 = scmp.eq.s32.totalorder %s19, 0
      %p117 = por %p115, %p116
      %p118 = scmp.ne.s32.totalorder %s107, %s110
      %p119 = scmp.eq.s32.totalorder %s24, 3
      %p120 = por %p118, %p119
      %p121 = scmp.ne.s32.totalorder %s110, %s111
      %p122 = scmp.eq.s32.totalorder %s24, 0
      %p123 = por %p121, %p122
      %p124 = scmp.ne.s32.totalorder %s110, %s111
      %p125 = scmp.eq.s32.totalorder %s25, 3
      %p126 = por %p124, %p125
      %p128 = scmp.ne.s32.totalorder %s111, %s127
      %p129 = scmp.eq.s32.totalorder %s25, 0
      %p130 = por %p128, %p129
      %s131 = ssub.s32 %s19, %s26
      %p132 = scmp.eq.s32.totalorder %s131, 0
      %s134 = sadd.s32 %s133, 1
      %s135 = scalar_select %p132, %s133, %s134
      %p138 = pneg %p132
      %p139 = scmp.eq.s32.totalorder %s19, 3
      %p140 = por %p138, %p139
      %p141 = scmp.ne.s32.totalorder %s133, %s136
      %p142 = scmp.eq.s32.totalorder %s19, 0
      %p143 = por %p141, %p142
      %p144 = scmp.ne.s32.totalorder %s133, %s136
      %p145 = scmp.eq.s32.totalorder %s24, 3
      %p146 = por %p144, %p145
      %p147 = scmp.ne.s32.totalorder %s136, %s137
      %p148 = scmp.eq.s32.totalorder %s24, 0
      %p149 = por %p147, %p148
      %p150 = scmp.ne.s32.totalorder %s136, %s137
      %p151 = scmp.eq.s32.totalorder %s25, 3
      %p152 = por %p150, %p151
      %p154 = scmp.ne.s32.totalorder %s137, %s153
      %p155 = scmp.eq.s32.totalorder %s25, 0
      %p156 = por %p154, %p155
      %p157 = scmp.le.s32.totalorder 1, %s19
      %p158 = scmp.lt.s32.totalorder %s19, 5
      %p159 = pnand %p157, %p158
      %p160 = pneg %p159
      // Predicated region
      $region9: #{idwt_conv.1} parent=5 // pred_check
        _
      $region10: #{idwt_conv.1} parent=5 // pred_check_branch
        %162 = sbr.rel (%p159) target = $region12
      $region11: #{idwt_conv.1} parent=5 // pred_region
        %s163 = ssub.s32 %s19, 1
      $region12: #{idwt_conv.1} parent=5 // pred_fallthru
        _
      %p164 = scmp.lt.s32.totalorder %s19, 4
      // Predicated region
      $region13: #{idwt_conv.1} parent=5 // pred_check
        %p165 = pneg %p164
      $region14: #{idwt_conv.1} parent=5 // pred_check_branch
        %167 = sbr.rel (%p165) target = $region16
      $region15: #{idwt_conv.1} parent=5 // pred_region
        // Predicated region
        $region17: #{idwt_conv.1} parent=15 // pred_check
          %p168 = pneg %p39
        $region18: #{idwt_conv.1} parent=15 // pred_check_branch
          %170 = sbr.rel (%p168) target = $region20
        $region19: #{idwt_conv.1} parent=15 // pred_region
          %s171 = sand.u32 %s29, 1
          %s172 = scalar_lea.sflag [#allocation3], %s171
          %s173 = sand.u32 %s29, 1
          %s174 = smul.addr %s173, 32
          %s175 = scalar_lea.vmem [#allocation2], %s174
          %s176 = smul.u32 4, %s19
          %178 = vsyncadd %s172, 0
          %s179 = smul.addr %s176, 8
          %s180 = scalar_lea.hbm %s0, %s179
          %s181 = sshll.u32 %s180, 4
          %s182 = int_to_ptr.hbm [resolvable:$true] %s181
          %s183 = sshll.u32 %s175, 4
          %s184 = int_to_ptr.vmem [resolvable:$true] %s183
          %189 = dma.hbm_to_vmem [thread:$0]  %s182, 512, %s184, %s172, 128, 128, 8
        $region20: #{idwt_conv.1} parent=15 // pred_fallthru
          _
        // Predicated region
        $region21: #{idwt_conv.1} parent=15 // pred_check
          %p190 = pneg %p65
        $region22: #{idwt_conv.1} parent=15 // pred_check_branch
          %192 = sbr.rel (%p190) target = $region24
        $region23: #{idwt_conv.1} parent=15 // pred_region
          %s193 = sand.u32 %s19, 1
          %s194 = scalar_lea.sflag [#allocation5], %s193
          %s195 = sand.u32 %s55, 1
          %s196 = smul.addr %s195, 32
          %s197 = scalar_lea.vmem [#allocation4], %s196
          %s198 = smul.u32 4, %s19
          %200 = vsyncadd %s194, 0
          %s201 = smul.addr %s198, 8
          %s202 = scalar_lea.hbm %s1, %s201
          %s203 = sshll.u32 %s202, 4
          %s204 = int_to_ptr.hbm [resolvable:$true] %s203
          %s205 = sshll.u32 %s197, 4
          %s206 = int_to_ptr.vmem [resolvable:$true] %s205
          %211 = dma.hbm_to_vmem [thread:$0]  %s204, 512, %s206, %s194, 128, 128, 8
        $region24: #{idwt_conv.1} parent=15 // pred_fallthru
          _
        // Predicated region
        $region25: #{idwt_conv.1} parent=15 // pred_check
          %p212 = pneg %p91
        $region26: #{idwt_conv.1} parent=15 // pred_check_branch
          %214 = sbr.rel (%p212) target = $region28
        $region27: #{idwt_conv.1} parent=15 // pred_region
          %s215 = sand.u32 %s19, 1
          %s216 = scalar_lea.sflag [#allocation5], %s215
          %s217 = sand.u32 %s81, 1
          %s218 = smul.addr %s217, 32
          %s219 = scalar_lea.vmem [#allocation6], %s218
          %s220 = smul.u32 4, %s19
          %222 = vsyncadd %s216, 0
          %s223 = smul.addr %s220, 8
          %s224 = scalar_lea.hbm %s2, %s223
          %s225 = sshll.u32 %s224, 4
          %s226 = int_to_ptr.hbm [resolvable:$true] %s225
          %s227 = sshll.u32 %s219, 4
          %s228 = int_to_ptr.vmem [resolvable:$true] %s227
          %233 = dma.hbm_to_vmem [thread:$0]  %s226, 512, %s228, %s216, 128, 128, 8
        $region28: #{idwt_conv.1} parent=15 // pred_fallthru
          _
        // Predicated region
        $region29: #{idwt_conv.1} parent=15 // pred_check
          %p234 = pneg %p117
        $region30: #{idwt_conv.1} parent=15 // pred_check_branch
          %236 = sbr.rel (%p234) target = $region32
        $region31: #{idwt_conv.1} parent=15 // pred_region
          %s237 = sand.u32 %s107, 1
          %s238 = scalar_lea.sflag [#allocation8], %s237
          %s239 = sand.u32 %s107, 1
          %s240 = smul.addr %s239, 32
          %s241 = scalar_lea.vmem [#allocation7], %s240
          %s242 = smul.u32 4, %s19
          %244 = vsyncadd %s238, 0
          %s245 = smul.addr %s242, 8
          %s246 = scalar_lea.hbm %s3, %s245
          %s247 = sshll.u32 %s246, 4
          %s248 = int_to_ptr.hbm [resolvable:$true] %s247
          %s249 = sshll.u32 %s241, 4
          %s250 = int_to_ptr.vmem [resolvable:$true] %s249
          %255 = dma.hbm_to_vmem [thread:$0]  %s248, 512, %s250, %s238, 128, 128, 8
        $region32: #{idwt_conv.1} parent=15 // pred_fallthru
          _
      $region16: #{idwt_conv.1} parent=5 // pred_fallthru
        _
      %p256 = scmp.le.s32.totalorder 1, %s19
      %p257 = scmp.lt.s32.totalorder %s19, 5
      %p258 = pnand %p256, %p257
      %p259 = pneg %p258
      // Predicated region
      $region33: #{idwt_conv.1} parent=5 // pred_check
        _
      $region34: #{idwt_conv.1} parent=5 // pred_check_branch
        %261 = sbr.rel (%p258) target = $region36
      $region35: #{idwt_conv.1} parent=5 // pred_region
        %s262 = ssub.s32 %s19, 1
        %s263 = sand.u32 %s32, 1
        %s264 = scalar_lea.sflag [#allocation3], %s263
        %s265 = sand.u32 %s32, 1
        %s266 = smul.addr %s265, 32
        %s267 = scalar_lea.vmem [#allocation2], %s266
        // Predicated region
        $region37: #{idwt_conv.1} parent=35 // pred_check
          %p268 = pneg %p45
        $region38: #{idwt_conv.1} parent=35 // pred_check_branch
          %270 = sbr.rel (%p268) target = $region40
        $region39: #{idwt_conv.1} parent=35 // pred_region
          %272 = dma.done %s264, 512
        $region40: #{idwt_conv.1} parent=35 // pred_fallthru
          _
        %s273 = sand.u32 %s24, 1
        %s274 = scalar_lea.sflag [#allocation5], %s273
        %s275 = sand.u32 %s58, 1
        %s276 = smul.addr %s275, 32
        %s277 = scalar_lea.vmem [#allocation4], %s276
        // Predicated region
        $region41: #{idwt_conv.1} parent=35 // pred_check
          %p278 = pneg %p71
        $region42: #{idwt_conv.1} parent=35 // pred_check_branch
          %280 = sbr.rel (%p278) target = $region44
        $region43: #{idwt_conv.1} parent=35 // pred_region
          %282 = dma.done %s274, 512
        $region44: #{idwt_conv.1} parent=35 // pred_fallthru
          _
        %s283 = sand.u32 %s24, 1
        %s284 = scalar_lea.sflag [#allocation5], %s283
        %s285 = sand.u32 %s84, 1
        %s286 = smul.addr %s285, 32
        %s287 = scalar_lea.vmem [#allocation6], %s286
        // Predicated region
        $region45: #{idwt_conv.1} parent=35 // pred_check
          %p288 = pneg %p97
        $region46: #{idwt_conv.1} parent=35 // pred_check_branch
          %290 = sbr.rel (%p288) target = $region48
        $region47: #{idwt_conv.1} parent=35 // pred_region
          %292 = dma.done %s284, 512
        $region48: #{idwt_conv.1} parent=35 // pred_fallthru
          _
        %s293 = sand.u32 %s110, 1
        %s294 = scalar_lea.sflag [#allocation8], %s293
        %s295 = sand.u32 %s110, 1
        %s296 = smul.addr %s295, 32
        %s297 = scalar_lea.vmem [#allocation7], %s296
        // Predicated region
        $region49: #{idwt_conv.1} parent=35 // pred_check
          %p298 = pneg %p123
        $region50: #{idwt_conv.1} parent=35 // pred_check_branch
          %300 = sbr.rel (%p298) target = $region52
        $region51: #{idwt_conv.1} parent=35 // pred_region
          %302 = dma.done %s294, 512
        $region52: #{idwt_conv.1} parent=35 // pred_fallthru
          _
        %s303 = sand.u32 %s32, 1
        %s304 = scalar_lea.sflag [#allocation3], %s303
        %s305 = sand.u32 %s32, 1
        %s306 = smul.addr %s305, 32
        %s307 = scalar_lea.vmem [#allocation2], %s306
        %p308 = pneg %p45
        %p309 = pneg %p42
        %s310 = sand.u32 %s24, 1
        %s311 = scalar_lea.sflag [#allocation5], %s310
        %s312 = sand.u32 %s58, 1
        %s313 = smul.addr %s312, 32
        %s314 = scalar_lea.vmem [#allocation4], %s313
        %p315 = pneg %p71
        %p316 = pneg %p68
        %s317 = sand.u32 %s24, 1
        %s318 = scalar_lea.sflag [#allocation5], %s317
        %s319 = sand.u32 %s84, 1
        %s320 = smul.addr %s319, 32
        %s321 = scalar_lea.vmem [#allocation6], %s320
        %p322 = pneg %p97
        %p323 = pneg %p94
        %s324 = sand.u32 %s110, 1
        %s325 = scalar_lea.sflag [#allocation8], %s324
        %s326 = sand.u32 %s110, 1
        %s327 = smul.addr %s326, 32
        %s328 = scalar_lea.vmem [#allocation7], %s327
        %p329 = pneg %p123
        %p330 = pneg %p120
        %p331 = pneg %p149
        %p332 = pneg %p146
        %s333 = smul.u32 4, %s24
        %p334 = scmp.lt.s32.totalorder %s333, 15
        %s335 = scalar_select %p334, %s333, 15
        %s336 = smul.addr %s335, 8
        %s337 = scalar_lea.vmem %s4, %s336
        %s338 = smul.u32 4, %s24
        %s339 = smul.u32 4, %s24
        %s340 = smul.u32 4, %s24
        %s341 = smul.u32 4, %s24
        %s342 = smul.u32 4, %s24
        %p343 = scmp.lt.s32.totalorder %s342, 15
        %s344 = scalar_select %p343, %s342, 15
        %s345 = smul.addr %s344, 8
        %s346 = scalar_lea.vmem %s4, %s345
        %s347 = smul.u32 4, %s24
        %v348 = vld [vmem:[%s267] sm:$0xff]
        %v349 = vld [vmem:[%s267 + $0x8] sm:$0xff]
        %v350 = vld [vmem:[%s267 + $0x10] sm:$0xff]
        %v351 = vld [vmem:[%s267 + $0x18] sm:$0xff]
        %v352 = vld [vmem:[%s277] sm:$0xff]
        %v353 = vld [vmem:[%s277 + $0x8] sm:$0xff]
        %v354 = vld [vmem:[%s277 + $0x10] sm:$0xff]
        %v355 = vld [vmem:[%s277 + $0x18] sm:$0xff]
        %v356 = vld [vmem:[%s287] sm:$0xff]
        %v357 = vld [vmem:[%s287 + $0x8] sm:$0xff]
        %v358 = vld [vmem:[%s287 + $0x10] sm:$0xff]
        %v359 = vld [vmem:[%s287 + $0x18] sm:$0xff]
        %v360 = vld [vmem:[%s297] sm:$0xff]
        %v361 = vld [vmem:[%s297 + $0x8] sm:$0xff]
        %v362 = vld [vmem:[%s297 + $0x10] sm:$0xff]
        %v363 = vld [vmem:[%s297 + $0x18] sm:$0xff]
        %v364 = vadd.f32 %v360, %v348
        %v365 = vadd.f32 %v361, %v349
        %v366 = vadd.f32 %v362, %v350
        %v367 = vadd.f32 %v363, %v351
        %v368 = vsub.f32 %v360, %v348
        %v369 = vsub.f32 %v361, %v349
        %v370 = vsub.f32 %v362, %v350
        %v371 = vsub.f32 %v363, %v351
        %v372 = vadd.f32 %v352, %v356
        %v373 = vadd.f32 %v353, %v357
        %v374 = vadd.f32 %v354, %v358
        %v375 = vadd.f32 %v355, %v359
        %v376 = vsub.f32 %v352, %v356
        %v377 = vsub.f32 %v353, %v357
        %v378 = vsub.f32 %v354, %v358
        %v379 = vsub.f32 %v355, %v359
        %v380 = vadd.f32 %v364, %v372
        %v381 = vadd.f32 %v365, %v373
        %v382 = vadd.f32 %v366, %v374
        %v383 = vadd.f32 %v367, %v375
        %v384 = vmul.f32 %v380, 0.5
        %v385 = vmul.f32 %v381, 0.5
        %v386 = vmul.f32 %v382, 0.5
        %v387 = vmul.f32 %v383, 0.5
        %v388 = vadd.f32 %v368, %v376
        %v389 = vadd.f32 %v369, %v377
        %v390 = vadd.f32 %v370, %v378
        %v391 = vadd.f32 %v371, %v379
        %v392 = vmul.f32 %v388, 0.5
        %v393 = vmul.f32 %v389, 0.5
        %v394 = vmul.f32 %v390, 0.5
        %v395 = vmul.f32 %v391, 0.5
        %v396 = vsub.f32 %v368, %v376
        %v397 = vsub.f32 %v369, %v377
        %v398 = vsub.f32 %v370, %v378
        %v399 = vsub.f32 %v371, %v379
        %v400 = vmul.f32 %v396, 0.5
        %v401 = vmul.f32 %v397, 0.5
        %v402 = vmul.f32 %v398, 0.5
        %v403 = vmul.f32 %v399, 0.5
        %v404 = vsub.f32 %v364, %v372
        %v405 = vsub.f32 %v365, %v373
        %v406 = vsub.f32 %v366, %v374
        %v407 = vsub.f32 %v367, %v375
        %v408 = vmul.f32 %v404, 0.5
        %v409 = vmul.f32 %v405, 0.5
        %v410 = vmul.f32 %v406, 0.5
        %v411 = vmul.f32 %v407, 0.5
        %vm412 = vcmask 130048
        %413 = vst.msk [vmem:[%s346] sm:$0xff] %vm412, %v384
        %414 = vst.msk [vmem:[%s346 + $0x8] sm:$0xff] %vm412, %v385
        %415 = vst.msk [vmem:[%s346 + $0x10] sm:$0xff] %vm412, %v386
        %416 = vst.msk [vmem:[%s346 + $0x18] sm:$0xff] %vm412, %v387
        %421 = vrot.lane.b32.xlu0 %v392, 16
        %v422 = vpop.permute.xlu0 %421
        %423 = vrot.lane.b32.xlu0 %v393, 16
        %v424 = vpop.permute.xlu0 %423
        %425 = vrot.lane.b32.xlu0 %v394, 16
        %v426 = vpop.permute.xlu0 %425
        %427 = vrot.lane.b32.xlu0 %v395, 16
        %v428 = vpop.permute.xlu0 %427
        %vm433 = vcmask 261248
        %434 = vst.msk [vmem:[%s346] sm:$0xff] %vm433, %v422
        %435 = vst.msk [vmem:[%s346 + $0x8] sm:$0xff] %vm433, %v424
        %436 = vst.msk [vmem:[%s346 + $0x10] sm:$0xff] %vm433, %v426
        %437 = vst.msk [vmem:[%s346 + $0x18] sm:$0xff] %vm433, %v428
        %442 = vrot.lane.b32.xlu0 %v400, 32
        %v443 = vpop.permute.xlu0 %442
        %444 = vrot.lane.b32.xlu0 %v401, 32
        %v445 = vpop.permute.xlu0 %444
        %446 = vrot.lane.b32.xlu0 %v402, 32
        %v447 = vpop.permute.xlu0 %446
        %448 = vrot.lane.b32.xlu0 %v403, 32
        %v449 = vpop.permute.xlu0 %448
        %vm454 = vcmask 392448
        %455 = vst.msk [vmem:[%s346] sm:$0xff] %vm454, %v443
        %456 = vst.msk [vmem:[%s346 + $0x8] sm:$0xff] %vm454, %v445
        %457 = vst.msk [vmem:[%s346 + $0x10] sm:$0xff] %vm454, %v447
        %458 = vst.msk [vmem:[%s346 + $0x18] sm:$0xff] %vm454, %v449
        %463 = vrot.lane.b32.xlu0 %v408, 48
        %v464 = vpop.permute.xlu0 %463
        %465 = vrot.lane.b32.xlu0 %v409, 48
        %v466 = vpop.permute.xlu0 %465
        %467 = vrot.lane.b32.xlu0 %v410, 48
        %v468 = vpop.permute.xlu0 %467
        %469 = vrot.lane.b32.xlu0 %v411, 48
        %v470 = vpop.permute.xlu0 %469
        %vm475 = vcmask 523648
        %476 = vst.msk [vmem:[%s346] sm:$0xff] %vm475, %v464
        %477 = vst.msk [vmem:[%s346 + $0x8] sm:$0xff] %vm475, %v466
        %478 = vst.msk [vmem:[%s346 + $0x10] sm:$0xff] %vm475, %v468
        %479 = vst.msk [vmem:[%s346 + $0x18] sm:$0xff] %vm475, %v470
        %s480 = smul.u32 4, %s24
        %p481 = scmp.lt.s32.totalorder %s480, 15
        %s482 = scalar_select %p481, %s480, 15
        %s483 = smul.addr %s482, 8
        %s484 = scalar_lea.vmem %s4, %s483
        // Predicated region
        $region53: #{idwt_conv.1} parent=35 // pred_check
          %p485 = pneg %p146
        $region54: #{idwt_conv.1} parent=35 // pred_check_branch
          %487 = sbr.rel (%p485) target = $region56
        $region55: #{idwt_conv.1} parent=35 // pred_region
          %s488 = smul.u32 4, %s24
        $region56: #{idwt_conv.1} parent=35 // pred_fallthru
          _
      $region36: #{idwt_conv.1} parent=5 // pred_fallthru
        _
      %p489 = scmp.le.s32.totalorder 2, %s19
      // Predicated region
      $region57: #{idwt_conv.1} parent=5 // pred_check
        %p490 = pneg %p489
      $region58: #{idwt_conv.1} parent=5 // pred_check_branch
        %492 = sbr.rel (%p490) target = $region60
      $region59: #{idwt_conv.1} parent=5 // pred_region
        %s493 = ssub.s32 %s19, 2
        // Predicated region
        $region61: #{idwt_conv.1} parent=59 // pred_check
          %p494 = pneg %p152
        $region62: #{idwt_conv.1} parent=59 // pred_check_branch
          %496 = sbr.rel (%p494) target = $region64
        $region63: #{idwt_conv.1} parent=59 // pred_region
          %s497 = smul.u32 4, %s25
          %p498 = scmp.lt.s32.totalorder %s497, 15
          %s499 = scalar_select %p498, %s497, 15
          %s500 = smul.addr %s499, 8
          %s501 = scalar_lea.vmem %s4, %s500
        $region64: #{idwt_conv.1} parent=59 // pred_fallthru
          _
      $region60: #{idwt_conv.1} parent=5 // pred_fallthru
        _
    $region6: #{idwt_conv.1} parent=1 // loop_footer
      %s23 = sadd.s32 1, %s19
    $region7: #{idwt_conv.1} parent=1 // loop_footer_branch
      %18 = sbr.rel target = $region3
    $region8: #{idwt_conv.1} parent=1 // loop_exit
      _
    %502 = vsyncpa [#allocation3], 1
    %s503 = scalar_lea.sflag [#allocation3], 1
    %504 = vsyncpa %s503, 1
    %505 = vsyncpa [#allocation5], 1
    %s506 = scalar_lea.sflag [#allocation5], 1
    %507 = vsyncpa %s506, 1
    %508 = vsyncpa [#allocation8], 1
    %s509 = scalar_lea.sflag [#allocation8], 1
    %510 = vsyncpa %s509, 1

</llo_original>
